<compile_context>
chip_gen: v5e
topology: v5e:2x2
jax: 0.10.0
libtpu: 0.0.40
codegen_flags: <defaults>
</compile_context>

<pallas_src>
import math
import functools

import jax
import jax.numpy as jnp
from jax import lax
from jax.experimental import pallas as pl
from jax.experimental.pallas import tpu as pltpu

MIN_F32 = float(jnp.finfo(jnp.float32).min)


def _round_up(x, m):
    return ((x + m - 1) // m) * m


def _pick_ff_chunk(ff):
    # Chunk the FFN hidden dim so the (T, ff_chunk) intermediate stays bounded.
    if ff <= 1024:
        return ff
    for c in (1024, 512, 256):
        if ff % c == 0:
            return c
    return ff


# ----------------------------------------------------------------------------
# Generic M-tiled matmul (+bias, optional ReLU) -- conv subsampling projections
# ----------------------------------------------------------------------------
def _matmul_bias_kernel(x_ref, w_ref, b_ref, o_ref, *, activation):
    y = jnp.dot(x_ref[...], w_ref[...], preferred_element_type=jnp.float32) + b_ref[...]
    if activation == "relu":
        y = jnp.maximum(y, 0.0)
    o_ref[...] = y


def pallas_matmul_bias(x, w, b, activation=None, tile_m=256):
    M, K = x.shape
    N = w.shape[1]
    tm = min(tile_m, _round_up(M, 8))
    Mp = _round_up(M, tm)
    if Mp != M:
        x = jnp.pad(x, ((0, Mp - M), (0, 0)))
    out = pl.pallas_call(
        functools.partial(_matmul_bias_kernel, activation=activation),
        out_shape=jax.ShapeDtypeStruct((Mp, N), jnp.float32),
        grid=(Mp // tm,),
        in_specs=[pl.BlockSpec((tm, K), lambda i: (i, 0)),
                  pl.BlockSpec((K, N), lambda i: (0, 0)),
                  pl.BlockSpec((1, N), lambda i: (0, 0))],
        out_specs=pl.BlockSpec((tm, N), lambda i: (i, 0)),
        compiler_params=pltpu.CompilerParams(dimension_semantics=("parallel",)),
    )(x.astype(jnp.bfloat16), w.astype(jnp.bfloat16),
      b.reshape(1, N).astype(jnp.float32))
    return out[:M]


# ----------------------------------------------------------------------------
# Conv2dSubsampling output Linear fused with PositionalEncoding (x*sqrt(D)+pe)
# ----------------------------------------------------------------------------
def _embed_kernel(x_ref, w_ref, b_ref, pe_ref, o_ref, *, xscale):
    y = jnp.dot(x_ref[0], w_ref[...], preferred_element_type=jnp.float32) + b_ref[...]
    o_ref[0] = y * xscale + pe_ref[...]


def pallas_embed(x3, w, b, pe, xscale):
    B, Tp, K = x3.shape
    D = w.shape[1]
    return pl.pallas_call(
        functools.partial(_embed_kernel, xscale=xscale),
        out_shape=jax.ShapeDtypeStruct((B, Tp, D), jnp.float32),
        grid=(B,),
        in_specs=[pl.BlockSpec((1, Tp, K), lambda b: (b, 0, 0)),
                  pl.BlockSpec((K, D), lambda b: (0, 0)),
                  pl.BlockSpec((1, D), lambda b: (0, 0)),
                  # pe is batch-independent: fetched once, reused for every b.
                  pl.BlockSpec((Tp, D), lambda b: (0, 0))],
        out_specs=pl.BlockSpec((1, Tp, D), lambda b: (b, 0, 0)),
        compiler_params=pltpu.CompilerParams(dimension_semantics=("parallel",)),
    )(x3, w, b, pe)


# ----------------------------------------------------------------------------
# All encoder layers + fused final after_norm in one pallas_call.
# grid = (batch, layer).  Output block is resident across the layer axis;
# stacked per-layer weights are prefetched behind the previous layer's compute.
# ----------------------------------------------------------------------------
def _encoder_layers_kernel(x_ref, mask_ref, vec_ref,
                           wq_ref, wk_ref, wv_ref, wo_ref,
                           w1_ref, b1_ref, w2_ref,
                           gf_ref, bf_ref,
                           o_ref,
                           k_scr, v_scr, ctx_scr,
                           *, num_heads, ff_chunk, eps):
    layer = pl.program_id(1)
    nb = pl.num_programs(1)
    bf16 = jnp.bfloat16

    # Layer 0: seed the resident residual stream with the embedded input.
    # TODO(synk): x is only read at layer 0; pl.Buffered(1) on its spec (or a
    # manual HBM->o_ref DMA) would free one Tp*D*4B VMEM buffer.
    @pl.when(layer == 0)
    def _():
        o_ref[...] = x_ref[...]

    x = o_ref[0]                              # (T, D) f32 residual stream
    T, D = x.shape
    d_k = D // num_heads
    n_kv = mask_ref.shape[1]
    kv_tile = mask_ref.shape[2]
    scale = 1.0 / math.sqrt(d_k)

    # Packed per-layer vectors: [g1, be1, bq, bk, bv, bo, g2, be2, b2]
    vecs = vec_ref[0]                         # (9, D) f32
    g1, be1 = vecs[0:1], vecs[1:2]
    bq, bk, bv, bo = vecs[2:3], vecs[3:4], vecs[4:5], vecs[5:6]
    g2, be2, b2 = vecs[6:7], vecs[7:8], vecs[8:9]

    def ln(v, g, b_):
        mu = jnp.mean(v, axis=-1, keepdims=True)
        var = jnp.mean(jnp.square(v - mu), axis=-1, keepdims=True)
        return (v - mu) * lax.rsqrt(var + eps) * g + b_

    # ---------------- multi-headed self attention (pre-norm) ----------------
    xn = ln(x, g1, be1).astype(bf16)
    q = jnp.dot(xn, wq_ref[0], preferred_element_type=jnp.float32) + bq
    k = jnp.dot(xn, wk_ref[0], preferred_element_type=jnp.float32) + bk
    v = jnp.dot(xn, wv_ref[0], preferred_element_type=jnp.float32) + bv

    # Head-major re-layout ONCE per layer: the per-head column slices of the
    # (T, D) projections happen here, not inside the kv loop.
    q_heads = []
    for h in range(num_heads):
        hs = h * d_k
        q_heads.append(q[:, hs:hs + d_k].astype(bf16))
        k_scr[h] = k[:, hs:hs + d_k].astype(bf16)      # (T, d_k)
        v_scr[h] = v[:, hs:hs + d_k].astype(bf16)      # (T, d_k)

    ms = [jnp.full((T, 1), MIN_F32, jnp.float32) for _ in range(num_heads)]
    ls = [jnp.zeros((T, 1), jnp.float32) for _ in range(num_heads)]
    accs = [jnp.zeros((T, d_k), jnp.float32) for _ in range(num_heads)]

    # Online softmax over key tiles.  n_kv is a static Python int -> the loop
    # is fully unrolled, giving the scheduler cross-step visibility.
    for ki in range(n_kv):
        ko = ki * kv_tile
        validf = mask_ref[0, ki:ki + 1, :]             # (1, kv_tile) f32, 1 = valid
        valid = validf > 0.0
        for h in range(num_heads):
            k_t = k_scr[h, ko:ko + kv_tile, :]         # (kv_tile, d_k) bf16
            v_t = v_scr[h, ko:ko + kv_tile, :]         # (kv_tile, d_k) bf16
            s = lax.dot_general(q_heads[h], k_t, (((1,), (1,)), ((), ())),
                                preferred_element_type=jnp.float32) * scale
            s = jnp.where(valid, s, MIN_F32)
            m_new = jnp.maximum(ms[h], jnp.max(s, axis=-1, keepdims=True))
            alpha = jnp.exp(ms[h] - m_new)
            # TODO(synk): on v6e/v7x a bf16 exp here would halve EUP cost.
            p = jnp.exp(s - m_new) * validf            # post-softmax zeroing of pads
            ls[h] = alpha * ls[h] + jnp.sum(p, axis=-1, keepdims=True)
            accs[h] = alpha * accs[h] + jnp.dot(p.astype(bf16), v_t,
                                                preferred_element_type=jnp.float32)
            ms[h] = m_new

    # Normalized context (bf16), assembled once per layer, feeds one full-width
    # (T, D) @ (D, D) MXU matmul for the output projection.
    for h in range(num_heads):
        hs = h * d_k
        inv = pl.reciprocal(jnp.maximum(ls[h], 1e-30), approx=True)
        ctx_scr[:, hs:hs + d_k] = (accs[h] * inv).astype(bf16)

    att = jnp.dot(ctx_scr[...], wo_ref[0], preferred_element_type=jnp.float32) + bo
    x = x + att

    # ---------------- position-wise feed forward (pre-norm) -----------------
    xn2 = ln(x, g2, be2).astype(bf16)
    ff = w1_ref.shape[2]
    y = jnp.zeros_like(x)
    for c in range(ff // ff_chunk):                    # FF chunking bounds the
        cs = c * ff_chunk                              # (T, FF) intermediate
        hid = jnp.dot(xn2, w1_ref[0, :, cs:cs + ff_chunk],
                      preferred_element_type=jnp.float32) + b1_ref[0, :, cs:cs + ff_chunk]
        hid = jnp.maximum(hid, 0.0).astype(bf16)
        y = y + jnp.dot(hid, w2_ref[0, cs:cs + ff_chunk, :],
                        preferred_element_type=jnp.float32)
    out = x + y + b2

    # Final after_norm (eps=1e-12) fused into the last layer's epilogue.
    @pl.when(layer < nb - 1)
    def _():
        o_ref[0] = out

    @pl.when(layer == nb - 1)
    def _():
        o_ref[0] = ln(out, gf_ref[...], bf_ref[...])


def encoder_layers(x, mask_tiles, lp, after_norm, num_heads):
    B, Tp, D = x.shape
    NB = lp["wq"].shape[0]
    FF = lp["w1"].shape[2]
    dk = D // num_heads
    n_kv, kv_tile = mask_tiles.shape[1], mask_tiles.shape[2]
    ff_chunk = _pick_ff_chunk(FF)

    bf16 = jnp.bfloat16
    wq, wk, wv = lp["wq"].astype(bf16), lp["wk"].astype(bf16), lp["wv"].astype(bf16)
    wo, w1, w2 = lp["wo"].astype(bf16), lp["w1"].astype(bf16), lp["w2"].astype(bf16)

    # Pack the nine per-layer (1, D) vectors into one (NB, 9, D) input stream.
    vecs = jnp.concatenate([lp["g1"], lp["be1"], lp["bq"], lp["bk"], lp["bv"],
                            lp["bo"], lp["g2"], lp["be2"], lp["b2"]], axis=1)
    g_f, b_f = after_norm

    def wspec(a, b_):
        # stacked per-layer weight (NB, a, b): block over the layer grid axis.
        return pl.BlockSpec((1, a, b_), lambda bb, l: (l, 0, 0))

    kernel = functools.partial(_encoder_layers_kernel, num_heads=num_heads,
                               ff_chunk=ff_chunk, eps=1e-12)

    # TODO(synk): for very long utterances add a query-tile grid axis so the
    # residual / K / V scratch scale with the tile (v7x: 64 MiB VMEM); on v7x
    # also consider batch-blocking 2 sequences per step to use both TCs.
    return pl.pallas_call(
        kernel,
        out_shape=jax.ShapeDtypeStruct((B, Tp, D), jnp.float32),
        grid=(B, NB),
        in_specs=[
            pl.BlockSpec((1, Tp, D), lambda bb, l: (bb, 0, 0)),          # embed out
            pl.BlockSpec((1, n_kv, kv_tile), lambda bb, l: (bb, 0, 0)),  # key mask tiles
            pl.BlockSpec((1, 9, D), lambda bb, l: (l, 0, 0)),            # packed vectors
            wspec(D, D), wspec(D, D), wspec(D, D), wspec(D, D),          # Wq Wk Wv Wo
            wspec(D, FF), wspec(1, FF), wspec(FF, D),                    # W1 b1 W2
            pl.BlockSpec((1, D), lambda bb, l: (0, 0)),                  # after_norm g
            pl.BlockSpec((1, D), lambda bb, l: (0, 0)),                  # after_norm b
        ],
        out_specs=pl.BlockSpec((1, Tp, D), lambda bb, l: (bb, 0, 0)),
        scratch_shapes=[pltpu.VMEM((num_heads, Tp, dk), bf16),   # K (head-major)
                        pltpu.VMEM((num_heads, Tp, dk), bf16),   # V (head-major)
                        pltpu.VMEM((Tp, D), bf16)],              # concat(context)
        compiler_params=pltpu.CompilerParams(
            dimension_semantics=("parallel", "arbitrary"),
            vmem_limit_bytes=64 * 1024 * 1024),
    )(x, mask_tiles, vecs, wq, wk, wv, wo, w1, lp["b1"], w2, g_f, b_f)


# ----------------------------------------------------------------------------
# Embedding (Conv2dSubsampling4 + PositionalEncoding)
# ----------------------------------------------------------------------------
def make_pos_enc(max_len, d_model):
    pos = jnp.arange(max_len, dtype=jnp.float32)[:, None]
    div = jnp.exp(jnp.arange(0, d_model, 2, dtype=jnp.float32)
                  * (-math.log(10000.0) / d_model))
    pe = jnp.zeros((max_len, d_model), jnp.float32)
    pe = pe.at[:, 0::2].set(jnp.sin(pos * div))
    pe = pe.at[:, 1::2].set(jnp.cos(pos * div))
    return pe


def conv2d_subsampling(x, conv_params, t_pad):
    # x: (B, L, F) channels-last (PyTorch does x.unsqueeze(1) -> NCHW (B,1,L,F)).
    w1, b1, w2, b2, wo, bo = conv_params      # w1:(C,1,3,3) w2:(C,C,3,3) wo:(C*F2,D)
    B, L, F = x.shape
    C = w1.shape[0]
    D = wo.shape[1]
    T1, F1 = (L - 3) // 2 + 1, (F - 3) // 2 + 1
    T2, F2 = (T1 - 3) // 2 + 1, (F1 - 3) // 2 + 1

    # conv1 (1->C, 3x3, stride 2) via im2col + tiled Pallas matmul, fused ReLU.
    # TODO(synk): K=9 im2col underfills MXU lanes; conv1 is a tiny fraction of
    # total FLOPs so this is left as-is.
    p = [x[:, i:i + 2 * (T1 - 1) + 1:2, j:j + 2 * (F1 - 1) + 1:2]
         for i in range(3) for j in range(3)]
    p1 = jnp.stack(p, axis=-1).reshape(B * T1 * F1, 9)
    w1m = jnp.transpose(w1, (2, 3, 1, 0)).reshape(9, C)
    h1 = pallas_matmul_bias(p1, w1m, b1, activation="relu").reshape(B, T1, F1, C)

    # conv2 (C->C, 3x3, stride 2) via im2col + tiled Pallas matmul, fused ReLU
    p = [h1[:, i:i + 2 * (T2 - 1) + 1:2, j:j + 2 * (F2 - 1) + 1:2, :]
         for i in range(3) for j in range(3)]
    p2 = jnp.stack(p, axis=3).reshape(B * T2 * F2, 9 * C)
    w2m = jnp.transpose(w2, (2, 3, 1, 0)).reshape(9 * C, C)
    h2 = pallas_matmul_bias(p2, w2m, b2, activation="relu").reshape(B, T2, F2, C)

    # torch: (B,C,T2,F2).transpose(1,2).view(B,T2,C*F2)  ->  (B,T2,C,F2) flatten
    h2 = jnp.transpose(h2, (0, 1, 3, 2)).reshape(B, T2, C * F2)
    if t_pad > T2:
        h2 = jnp.pad(h2, ((0, 0), (0, t_pad - T2), (0, 0)))

    pe = make_pos_enc(t_pad, D)
    out = pallas_embed(h2.astype(jnp.bfloat16), wo.astype(jnp.bfloat16),
                       bo.reshape(1, D).astype(jnp.float32), pe, math.sqrt(D))
    return out                                  # (B, t_pad, D) f32


# ----------------------------------------------------------------------------
# Parameters (deterministic synthetic init, layer weights stacked over blocks)
# ----------------------------------------------------------------------------
def init_params(key, input_size, output_size, attention_heads, linear_units, num_blocks):
    D, FF, NB = output_size, linear_units, num_blocks
    F2 = ((input_size - 1) // 2 - 1) // 2
    keys = iter(jax.random.split(key, 32))

    def w(shape, scale=0.05):
        return jax.random.normal(next(keys), shape, jnp.float32) * scale

    conv = (w((D, 1, 3, 3)), w((D,)), w((D, D, 3, 3)), w((D,)),
            w((D * F2, D)), w((D,)))

    layers = {
        "g1": jnp.ones((NB, 1, D), jnp.float32),
        "be1": jnp.zeros((NB, 1, D), jnp.float32),
        "wq": w((NB, D, D)), "bq": w((NB, 1, D)),
        "wk": w((NB, D, D)), "bk": w((NB, 1, D)),
        "wv": w((NB, D, D)), "bv": w((NB, 1, D)),
        "wo": w((NB, D, D)), "bo": w((NB, 1, D)),
        "g2": jnp.ones((NB, 1, D), jnp.float32),
        "be2": jnp.zeros((NB, 1, D), jnp.float32),
        "w1": w((NB, D, FF)), "b1": w((NB, 1, FF)),
        "w2": w((NB, FF, D)), "b2": w((NB, 1, D)),
    }
    after_norm = (jnp.ones((1, D), jnp.float32), jnp.zeros((1, D), jnp.float32))
    return {"conv": conv, "layers": layers, "after_norm": after_norm}


# ----------------------------------------------------------------------------
# Full forward (mirrors TransformerEncoder.forward)
# ----------------------------------------------------------------------------
def transformer_encoder_forward(xs_pad, ilens, params, *, attention_heads):
    B, L, F = xs_pad.shape

    # masks = ~make_pad_mask(ilens).unsqueeze(1)    (assumes max(ilens) == L)
    pos = jnp.arange(L)[None, :]
    masks = (pos < ilens[:, None])[:, None, :]               # (B,1,L) bool

    T1 = (L - 3) // 2 + 1
    T2 = (T1 - 3) // 2 + 1
    kv_tile = min(512, _round_up(T2, 128))                   # lane-dense key tiles
    t_pad = _round_up(T2, kv_tile)
    n_kv = t_pad // kv_tile

    x = conv2d_subsampling(xs_pad, params["conv"], t_pad)    # (B, t_pad, D)

    masks_sub = masks[:, :, :-2:2][:, :, :-2:2]              # (B,1,T2) subsample by 4
    # add_optional_chunk_mask with use_dynamic_chunk=False, static_chunk_size=0
    # -> chunk_masks == masks; reshape into key tiles (padding keys are invalid).
    mask_f = masks_sub[:, 0, :].astype(jnp.float32)          # (B, T2)
    mask_f = jnp.pad(mask_f, ((0, 0), (0, t_pad - T2)))
    mask_tiles = mask_f.reshape(B, n_kv, kv_tile)

    # num_blocks encoder layers + fused final after_norm (normalize_before=True)
    x = encoder_layers(x, mask_tiles, params["layers"], params["after_norm"],
                       attention_heads)
    return x[:, :T2, :], masks_sub


# TODO(synk): dropout layers are modeled as eval-mode identity; dynamic/static
# chunk masking branches are not exercised (defaults give chunk_masks == masks).

if __name__ == "__main__":
    key = jax.random.PRNGKey(0)
    k_in, k_par = jax.random.split(key)

    B, L, F_IN = 2, 16, 16            # batch, seq len, input feature dim
    D, H, FF, NBLOCKS = 32, 4, 64, 2  # output_size, heads, linear_units, num_blocks

    xs_pad = jax.random.normal(k_in, (B, L, F_IN), jnp.float32)
    ilens = jnp.array([16, 6], dtype=jnp.int32)   # second sequence is padded

    params = init_params(k_par, F_IN, D, H, FF, NBLOCKS)
    out, masks = transformer_encoder_forward(xs_pad, ilens, params, attention_heads=H)
    jax.block_until_ready(out)
    assert out.shape == (B, ((L - 1) // 2 - 1) // 2, D)
    print("KERNEL_OK")
</pallas_src>

<mosaic_0001>
module attributes {stable_mosaic.version = 11 : i64} {
  func.func @_matmul_bias_kernel(%arg0: i32, %arg1: memref<104x9xbf16, #tpu.memory_space<vmem>>, %arg2: memref<9x32xbf16, #tpu.memory_space<vmem>>, %arg3: memref<1x32xf32, #tpu.memory_space<vmem>>, %arg4: memref<104x32xf32, #tpu.memory_space<vmem>>) attributes {dimension_semantics = [#tpu.dimension_semantics<parallel>], iteration_bounds = array<i64: 1>, scalar_prefetch = 0 : i64, scratch_operands = 0 : i64, tpu.core_type = #tpu.core_type<tc>, window_params = [{transform_indices = @transform_0, window_bounds = array<i64: 104, 9>}, {pipeline_mode = #tpu.pipeline_mode<synchronous>, transform_indices = @transform_1, window_bounds = array<i64: 9, 32>}, {pipeline_mode = #tpu.pipeline_mode<synchronous>, transform_indices = @transform_2, window_bounds = array<i64: 1, 32>}, {transform_indices = @transform_3, window_bounds = array<i64: 104, 32>}]} {
    %c0 = arith.constant 0 : index
    %c0_0 = arith.constant 0 : index
    %0 = vector.load %arg1[%c0, %c0_0] : memref<104x9xbf16, #tpu.memory_space<vmem>>, vector<104x9xbf16>
    %c0_1 = arith.constant 0 : index
    %c0_2 = arith.constant 0 : index
    %1 = vector.load %arg2[%c0_1, %c0_2] : memref<9x32xbf16, #tpu.memory_space<vmem>>, vector<9x32xbf16>
    %cst = arith.constant dense<0.000000e+00> : vector<104x32xf32>
    %2 = tpu.matmul %0, %1, %cst {dimension_numbers = #tpu.dot_dimension_numbers<[1], [0], [0], [1], [0, 0, 1, 1], [], []>} : vector<104x9xbf16>, vector<9x32xbf16>, vector<104x32xf32> -> vector<104x32xf32>
    %c0_3 = arith.constant 0 : index
    %c0_4 = arith.constant 0 : index
    %3 = vector.load %arg3[%c0_3, %c0_4] : memref<1x32xf32, #tpu.memory_space<vmem>>, vector<1x32xf32>
    %4 = vector.broadcast %3 : vector<1x32xf32> to vector<104x32xf32>
    %5 = arith.addf %2, %4 : vector<104x32xf32>
    %cst_5 = arith.constant 0.000000e+00 : f32
    %6 = vector.broadcast %cst_5 : f32 to vector<104x32xf32>
    %7 = arith.maximumf %5, %6 : vector<104x32xf32>
    %c0_6 = arith.constant 0 : index
    %c0_7 = arith.constant 0 : index
    %8 = vector.load %arg4[%c0_6, %c0_7] : memref<104x32xf32, #tpu.memory_space<vmem>>, vector<104x32xf32>
    tpu.vector_store %arg4[%c0_6, %c0_7], %7 {strides = array<i32>} : memref<104x32xf32, #tpu.memory_space<vmem>>, vector<104x32xf32>,
    return
  }
  func.func @transform_0(%arg0: i32) -> (i32, i32) {
    %c0_i32 = arith.constant 0 : i32
    %c0_i32_0 = arith.constant 0 : i32
    return %arg0, %c0_i32 : i32, i32
  }
  func.func @transform_1(%arg0: i32) -> (i32, i32) {
    %c0_i32 = arith.constant 0 : i32
    %c0_i32_0 = arith.constant 0 : i32
    %c0_i32_1 = arith.constant 0 : i32
    return %c0_i32, %c0_i32_0 : i32, i32
  }
  func.func @transform_2(%arg0: i32) -> (i32, i32) {
    %c0_i32 = arith.constant 0 : i32
    %c0_i32_0 = arith.constant 0 : i32
    %c0_i32_1 = arith.constant 0 : i32
    return %c0_i32, %c0_i32_0 : i32, i32
  }
  func.func @transform_3(%arg0: i32) -> (i32, i32) {
    %c0_i32 = arith.constant 0 : i32
    %c0_i32_0 = arith.constant 0 : i32
    return %arg0, %c0_i32 : i32, i32
  }
}

</mosaic_0001>

<llo_original>
// kernel: tpu_custom_call.1
$region0: #{tpu_custom_call.1}
  #allocation0 [shape = 'u32[]', space=smem, size = 0x4, offset = 0x4, fixed_abs, tag = 'smem constant byte address 0x4 - core index']
  #allocation1 [shape = 'u32[72,128]{1,0:T(1,128)}', space=vmem, size = 0x9000, scoped, tag = 'internal scratch']
  %s0 = inlined_call_operand.vmem [shape: bf16[104,9], index: 0, kind: input, shape index: {}]
  %s1 = inlined_call_operand.vmem [shape: bf16[9,32], index: 1, kind: input, shape index: {}]
  %s2 = inlined_call_operand.vmem [shape: f32[1,32], index: 2, kind: input, shape index: {}]
  %s3 = inlined_call_operand.vmem [shape: f32[104,32], index: 3, kind: output, shape index: {}]
  %s4 = sld [smem:[#allocation0]]
  $region22: #{tpu_custom_call.1} parent=0
    _
  %s6 = ssub.s32 1, %s4
  %s7 = scalar_select 0, %s6, %s4
  // Predicated region
  $region2: #{tpu_custom_call.1} parent=0 // pred_check
    _
  $region3: #{tpu_custom_call.1} parent=0 // pred_check_branch
    %9 = sbr.rel (0) target = $region5
  $region4: #{tpu_custom_call.1} parent=0 // pred_region
    _
  $region5: #{tpu_custom_call.1} parent=0 // pred_fallthru
    _
  // Predicated region
  $region6: #{tpu_custom_call.1} parent=0 // pred_check
    _
  $region7: #{tpu_custom_call.1} parent=0 // pred_check_branch
    %11 = sbr.rel (0) target = $region9
  $region8: #{tpu_custom_call.1} parent=0 // pred_region
    _
  $region9: #{tpu_custom_call.1} parent=0 // pred_fallthru
    _
  // Predicated region
  $region10: #{tpu_custom_call.1} parent=0 // pred_check
    _
  $region11: #{tpu_custom_call.1} parent=0 // pred_check_branch
    %13 = sbr.rel (0) target = $region13
  $region12: #{tpu_custom_call.1} parent=0 // pred_region
    _
  $region13: #{tpu_custom_call.1} parent=0 // pred_fallthru
    _
  %v15 = vld [vmem:[%s0] sm:$0xf]
  %v16 = vld [vmem:[%s0 + $0x4] sm:$0xf]
  %v17 = vld [vmem:[%s0 + $0x8] sm:$0xf]
  %v18 = vld [vmem:[%s0 + $0xc] sm:$0xf]
  %v19 = vld [vmem:[%s0 + $0x10] sm:$0xf]
  %v20 = vld [vmem:[%s0 + $0x14] sm:$0xf]
  %v21 = vld [vmem:[%s0 + $0x18] sm:$0xf]
  %v22 = vld [vmem:[%s0 + $0x1c] sm:$0xf]
  %v23 = vld [vmem:[%s0 + $0x20] sm:$0xf]
  %v24 = vld [vmem:[%s0 + $0x24] sm:$0xf]
  %v25 = vld [vmem:[%s0 + $0x28] sm:$0xf]
  %v26 = vld [vmem:[%s0 + $0x2c] sm:$0xf]
  %v27 = vld [vmem:[%s0 + $0x30] sm:$0xf]
  %v28 = vld [vmem:[%s1] sm:$0xf]
  %v29 = vld [vmem:[%s1 + $0x4] sm:$0x1]
  %v30 = vld [vmem:[%s2] sm:$0x1]
  %v32 = vperm.slane %v30, 0
  %v47 = vunpack.c.l.b16 %v15
  %v48 = vunpack.c.l.b16 %v16
  %v49 = vunpack.c.l.b16 %v17
  %v50 = vunpack.c.l.b16 %v18
  %v51 = vunpack.c.l.b16 %v19
  %v52 = vunpack.c.l.b16 %v20
  %v53 = vunpack.c.l.b16 %v21
  %v54 = vunpack.c.l.b16 %v22
  %v55 = vunpack.c.l.b16 %v23
  %v56 = vunpack.c.l.b16 %v24
  %v57 = vunpack.c.l.b16 %v25
  %v58 = vunpack.c.l.b16 %v26
  %v59 = vunpack.c.l.b16 %v27
  %v60 = vpack.c.b16 %v48, %v47
  %v61 = vpack.c.b16 %v50, %v49
  %v62 = vpack.c.b16 %v52, %v51
  %v63 = vpack.c.b16 %v54, %v53
  %v64 = vpack.c.b16 %v56, %v55
  %v65 = vpack.c.b16 %v58, %v57
  %v66 = vpack.c.b16 %v59, %v59
  %v69 = vunpack.c.l.b16 %v28
  %v70 = vunpack.c.l.b16 %v29
  %v71 = vpack.c.b16 %v70, %v69
  %vm72 = vcmask 72704
  %v74 = vsel %vm72, %v60, 0
  %v77 = vsel %vm72, %v61, 0
  %v80 = vsel %vm72, %v62, 0
  %v83 = vsel %vm72, %v63, 0
  %v86 = vsel %vm72, %v64, 0
  %v89 = vsel %vm72, %v65, 0
  %v92 = vsel %vm72, %v66, 0
  %vm94 = vcmask 1043456
  %vm95 = vcmask 1044480
  %v96 = vsel %vm94, 4294967295, 65535
  %v97 = vsel %vm95, %v96, 0
  %v99 = vand.u32 %v71, %v97
  %101 = vmatpush.bf16.msra.mxu0 0
  %102 = vmatpush.bf16.msra.mxu0 0
  %103 = vmatpush.bf16.msra.mxu0 0
  %104 = vmatpush.bf16.msra.mxu0 0
  %105 = vmatpush.bf16.msra.mxu0 0
  %106 = vmatpush.bf16.msra.mxu0 0
  %107 = vmatpush.bf16.msra.mxu0 0
  %108 = vmatpush.bf16.msra.mxu0 %v99
  %109 = vmatmul.bf16.gmra.mxu0 %v74
  %v110 = vpop.f32.mrf.mxu0
  %v111 = vadd.f32 %v32, %v110
  %v112 = vpop.f32.mrf.mxu0
  %v113 = vadd.f32 %v32, %v112
  %114 = vmatmul.bf16.gmra.mxu0 %v77
  %v115 = vpop.f32.mrf.mxu0
  %v116 = vadd.f32 %v32, %v115
  %v117 = vpop.f32.mrf.mxu0
  %v118 = vadd.f32 %v32, %v117
  %119 = vmatmul.bf16.gmra.mxu0 %v80
  %v120 = vpop.f32.mrf.mxu0
  %v121 = vadd.f32 %v32, %v120
  %v122 = vpop.f32.mrf.mxu0
  %v123 = vadd.f32 %v32, %v122
  %124 = vmatmul.bf16.gmra.mxu0 %v83
  %v125 = vpop.f32.mrf.mxu0
  %v126 = vadd.f32 %v32, %v125
  %v127 = vpop.f32.mrf.mxu0
  %v128 = vadd.f32 %v32, %v127
  %129 = vmatmul.bf16.gmra.mxu0 %v86
  %v130 = vpop.f32.mrf.mxu0
  %v131 = vadd.f32 %v32, %v130
  %v132 = vpop.f32.mrf.mxu0
  %v133 = vadd.f32 %v32, %v132
  %134 = vmatmul.bf16.gmra.mxu0 %v89
  %v135 = vpop.f32.mrf.mxu0
  %v136 = vadd.f32 %v32, %v135
  %v137 = vpop.f32.mrf.mxu0
  %v138 = vadd.f32 %v32, %v137
  %139 = vmatmul.bf16.gmra.mxu0 %v92
  %v140 = vpop.f32.mrf.mxu0
  %v141 = vadd.f32 %v32, %v140
  %v142 = vpop.f32.mrf.mxu0
  %143 = vdwg.mxu0
  %v144 = vmax.f32 %v111, 0.0
  %v145 = vmax.f32 %v113, 0.0
  %v146 = vmax.f32 %v116, 0.0
  %v147 = vmax.f32 %v118, 0.0
  %v148 = vmax.f32 %v121, 0.0
  %v149 = vmax.f32 %v123, 0.0
  %v150 = vmax.f32 %v126, 0.0
  %v151 = vmax.f32 %v128, 0.0
  %v152 = vmax.f32 %v131, 0.0
  %v153 = vmax.f32 %v133, 0.0
  %v154 = vmax.f32 %v136, 0.0
  %v155 = vmax.f32 %v138, 0.0
  %v156 = vmax.f32 %v141, 0.0
  %vm157 = vcmask 261120
  %158 = vst.msk [vmem:[%s3] sm:$0xff] %vm157, %v144
  %159 = vst.msk [vmem:[%s3 + $0x8] sm:$0xff] %vm157, %v145
  %160 = vst.msk [vmem:[%s3 + $0x10] sm:$0xff] %vm157, %v146
  %161 = vst.msk [vmem:[%s3 + $0x18] sm:$0xff] %vm157, %v147
  %162 = vst.msk [vmem:[%s3 + $0x20] sm:$0xff] %vm157, %v148
  %163 = vst.msk [vmem:[%s3 + $0x28] sm:$0xff] %vm157, %v149
  %164 = vst.msk [vmem:[%s3 + $0x30] sm:$0xff] %vm157, %v150
  %165 = vst.msk [vmem:[%s3 + $0x38] sm:$0xff] %vm157, %v151
  %166 = vst.msk [vmem:[%s3 + $0x40] sm:$0xff] %vm157, %v152
  %167 = vst.msk [vmem:[%s3 + $0x48] sm:$0xff] %vm157, %v153
  %168 = vst.msk [vmem:[%s3 + $0x50] sm:$0xff] %vm157, %v154
  %169 = vst.msk [vmem:[%s3 + $0x58] sm:$0xff] %vm157, %v155
  %170 = vst.msk [vmem:[%s3 + $0x60] sm:$0xff] %vm157, %v156
  // Predicated region
  $region14: #{tpu_custom_call.1} parent=0 // pred_check
    _
  $region15: #{tpu_custom_call.1} parent=0 // pred_check_branch
    %172 = sbr.rel (0) target = $region17
  $region16: #{tpu_custom_call.1} parent=0 // pred_region
    _
  $region17: #{tpu_custom_call.1} parent=0 // pred_fallthru
    _
  // Predicated region
  $region18: #{tpu_custom_call.1} parent=0 // pred_check
    _
  $region19: #{tpu_custom_call.1} parent=0 // pred_check_branch
    %174 = sbr.rel (0) target = $region21
  $region20: #{tpu_custom_call.1} parent=0 // pred_region
    _
  $region21: #{tpu_custom_call.1} parent=0 // pred_fallthru
    _

</llo_original>
